<compile_context>
chip_gen: v7x
topology: tpu7x:2x2x1
jax: 0.10.0
libtpu: 0.0.40
codegen_flags: <defaults>
</compile_context>

<pallas_src>
import numpy as np
import jax
import jax.numpy as jnp
from jax.experimental import pallas as pl
from jax.experimental.pallas import tpu as pltpu

# ---- "config" constants -----------------------------------------------------
PRIM_NUM = 4
BATCH = 2
SHAPE_LR_DECAY = 0.01
SHAPE_BOUND = 0.5
TRANS_LR_DECAY = 0.2
MOVE_BOUND = 0.5
IN_FEATURES = 128 + PRIM_NUM * 10   # 168

# ---- fused output column layout (44 real columns, padded to 128 lanes) ------
N_SHAPE = PRIM_NUM * 3              # 12
N_TRANS = PRIM_NUM * 3              # 12
N_CONFI = PRIM_NUM * 1              # 4
N_QUAT = PRIM_NUM * 4               # 16
OFF_SHAPE = 0
OFF_TRANS = OFF_SHAPE + N_SHAPE     # 12
OFF_CONFI = OFF_TRANS + N_TRANS     # 24
OFF_QUAT = OFF_CONFI + N_CONFI      # 28
N_REAL = OFF_QUAT + N_QUAT          # 44
N_PAD = 128                         # lane-dense output width

# ---- merged constant array layout (rows) -------------------------------------
ROW_BIAS = IN_FEATURES              # 168: fused, pre-scaled bias (incl. quat [1,0,0,0])
ROW_SCALE = IN_FEATURES + 1         # 169: per-column tanh scale (0 on quat/pad lanes)
ROW_OFFSET = IN_FEATURES + 2        # 170: per-column offset (0.5 on confi lanes)
ROW_QMASK = IN_FEATURES + 3         # 171: 1.0 on quat lanes (pass raw z through)
C_ROWS = IN_FEATURES + 8            # 176 (sublane-aligned)


# ---- Pallas kernel ----------------------------------------------------------
def primitive_pred_kernel(x_ref, c_ref, out_ref):
    # x: [TB, 168]; c: [176, 128] = [W (rows 0..167) | bias | scale | offset | qmask | pad]
    x = x_ref[...]
    w = c_ref[0:IN_FEATURES, :]                         # static, sublane-aligned slice
    z = jnp.dot(x, w, preferred_element_type=jnp.float32) + c_ref[ROW_BIAS:ROW_BIAS + 1, :]
    # shape/trans/confi columns: scale*tanh(z)+offset ; quat columns: raw z passthrough
    # (normalized in the wrapper); padding columns: all consts zero -> output zero.
    out_ref[...] = (c_ref[ROW_SCALE:ROW_SCALE + 1, :] * jnp.tanh(z)
                    + c_ref[ROW_OFFSET:ROW_OFFSET + 1, :]
                    + c_ref[ROW_QMASK:ROW_QMASK + 1, :] * z)


# ---- one-time parameter packing (constant folding) ---------------------------
def pack_params(params):
    ws, bs, wt, bt, wq, bq, wc, bc = (np.asarray(p, np.float32) for p in params)

    C = np.zeros((C_ROWS, N_PAD), np.float32)
    W = C[:IN_FEATURES]                                  # view into C
    # shape heads: output = shapeBound * tanh(shapeLrDecay * (xW+b))
    W[:, OFF_SHAPE:OFF_SHAPE + N_SHAPE] = ws * SHAPE_LR_DECAY
    C[ROW_BIAS, OFF_SHAPE:OFF_SHAPE + N_SHAPE] = bs.reshape(-1) * SHAPE_LR_DECAY
    C[ROW_SCALE, OFF_SHAPE:OFF_SHAPE + N_SHAPE] = SHAPE_BOUND
    # trans heads: output = moveBound * tanh(transLrDecay * (xW+b))
    W[:, OFF_TRANS:OFF_TRANS + N_TRANS] = wt * TRANS_LR_DECAY
    C[ROW_BIAS, OFF_TRANS:OFF_TRANS + N_TRANS] = bt.reshape(-1) * TRANS_LR_DECAY
    C[ROW_SCALE, OFF_TRANS:OFF_TRANS + N_TRANS] = MOVE_BOUND
    # confi heads: output = 0.5 * tanh(xW+b) + 0.5
    W[:, OFF_CONFI:OFF_CONFI + N_CONFI] = wc
    C[ROW_BIAS, OFF_CONFI:OFF_CONFI + N_CONFI] = bc.reshape(-1)
    C[ROW_SCALE, OFF_CONFI:OFF_CONFI + N_CONFI] = 0.5
    C[ROW_OFFSET, OFF_CONFI:OFF_CONFI + N_CONFI] = 0.5
    # quat heads: 0.01 scale and [1,0,0,0] bias folded; kernel emits raw z here
    W[:, OFF_QUAT:OFF_QUAT + N_QUAT] = wq * 0.01
    qbias = np.tile(np.array([1.0, 0.0, 0.0, 0.0], np.float32), PRIM_NUM)
    C[ROW_BIAS, OFF_QUAT:OFF_QUAT + N_QUAT] = bq.reshape(-1) * 0.01 + qbias
    C[ROW_QMASK, OFF_QUAT:OFF_QUAT + N_QUAT] = 1.0

    return jnp.asarray(C)


# ---- wrapper ----------------------------------------------------------------
# TODO(synk): highest-value change per review is fusing this head as an epilogue
# of the upstream kernel that produces x (keep x in VMEM); not possible here
# since this module is standalone.
def primitive_pred(x, consts, *, row_block=128):
    B = x.shape[0]
    if B <= row_block:
        TB = B                      # full-array block (allowed even if B % 8 != 0)
        x_in = x
    else:
        TB = row_block
        Bp = pl.cdiv(B, TB) * TB
        x_in = jnp.pad(x, ((0, Bp - B), (0, 0)))
    Bp = x_in.shape[0]
    grid_n = Bp // TB

    cost = pl.CostEstimate(
        flops=2 * Bp * IN_FEATURES * N_PAD,
        transcendentals=Bp * N_PAD,
        bytes_accessed=4 * (Bp * IN_FEATURES + C_ROWS * N_PAD + Bp * N_PAD),
    )

    out = pl.pallas_call(
        primitive_pred_kernel,
        out_shape=jax.ShapeDtypeStruct((Bp, N_PAD), jnp.float32),
        grid=(grid_n,),
        in_specs=[
            pl.BlockSpec((TB, IN_FEATURES), lambda i: (i, 0)),
            pl.BlockSpec((C_ROWS, N_PAD), lambda i: (0, 0)),   # resident constants
        ],
        out_specs=pl.BlockSpec((TB, N_PAD), lambda i: (i, 0)),
        compiler_params=pltpu.CompilerParams(
            dimension_semantics=("parallel",)),
        cost_estimate=cost,
    )(x_in, consts)

    out = out[:B]
    # element order matches torch.stack(dim=0).transpose(0,1).reshape(B, P, K)
    shape_rlt = out[:, OFF_SHAPE:OFF_SHAPE + N_SHAPE].reshape(B, PRIM_NUM, 3)
    trans_rlt = out[:, OFF_TRANS:OFF_TRANS + N_TRANS].reshape(B, PRIM_NUM, 3)
    confi_rlt = out[:, OFF_CONFI:OFF_CONFI + N_CONFI].reshape(B, PRIM_NUM, 1)
    q = out[:, OFF_QUAT:OFF_QUAT + N_QUAT].reshape(B, PRIM_NUM, 4)
    # F.normalize(dim=-1, eps=1e-12); tiny (B*P*4) work, fuses with the slices.
    quat_rlt = q / jnp.maximum(jnp.linalg.norm(q, axis=-1, keepdims=True), 1e-12)
    return shape_rlt, trans_rlt, quat_rlt, confi_rlt


# ---- pure-JAX reference (for correctness check) ------------------------------
def primitive_pred_ref(x, params):
    ws, bs, wt, bt, wq, bq, wc, bc = params
    B = x.shape[0]
    s = SHAPE_BOUND * jnp.tanh(SHAPE_LR_DECAY * (x @ ws + bs))
    t = MOVE_BOUND * jnp.tanh(TRANS_LR_DECAY * (x @ wt + bt))
    q = ((x @ wq + bq) * 0.01).reshape(B, PRIM_NUM, 4)
    q = q + jnp.array([1.0, 0.0, 0.0, 0.0], jnp.float32)
    q = q / jnp.maximum(jnp.linalg.norm(q, axis=-1, keepdims=True), 1e-12)
    c = 0.5 * jnp.tanh(x @ wc + bc) + 0.5
    return (s.reshape(B, PRIM_NUM, 3), t.reshape(B, PRIM_NUM, 3),
            q, c.reshape(B, PRIM_NUM, 1))


def init_params(key):
    ks = jax.random.split(key, 4)
    # PyTorch: weight ~ N(0, 0.02), bias = 0 for all heads (non-org branch).
    ws = 0.02 * jax.random.normal(ks[0], (IN_FEATURES, PRIM_NUM * 3), jnp.float32)
    wt = 0.02 * jax.random.normal(ks[1], (IN_FEATURES, PRIM_NUM * 3), jnp.float32)
    wq = 0.02 * jax.random.normal(ks[2], (IN_FEATURES, PRIM_NUM * 4), jnp.float32)
    wc = 0.02 * jax.random.normal(ks[3], (IN_FEATURES, PRIM_NUM * 1), jnp.float32)
    bs = jnp.zeros((1, PRIM_NUM * 3), jnp.float32)
    bt = jnp.zeros((1, PRIM_NUM * 3), jnp.float32)
    bq = jnp.zeros((1, PRIM_NUM * 4), jnp.float32)
    bc = jnp.zeros((1, PRIM_NUM * 1), jnp.float32)
    return ws, bs, wt, bt, wq, bq, wc, bc


if __name__ == "__main__":
    key = jax.random.PRNGKey(0)
    kx, kp, kb = jax.random.split(key, 3)
    params = init_params(kp)
    consts = pack_params(params)            # one-time constant folding / fusion

    primitive_pred_jit = jax.jit(primitive_pred)

    # --- small case matching the module config (batch=2) ---
    x = jax.random.normal(kx, (BATCH, IN_FEATURES), jnp.float32)
    outs = jax.block_until_ready(primitive_pred_jit(x, consts))
    refs = primitive_pred_ref(x, params)
    for o, r in zip(outs, refs):
        assert o.shape == r.shape, (o.shape, r.shape)
        assert jnp.allclose(o, r, rtol=1e-4, atol=1e-5), "mismatch vs reference (B=2)"

    # --- batched path: exercises the row-block grid (constants VMEM-resident,
    #     "parallel" row axis for v7x megacore) and row padding ---
    xb = jax.random.normal(kb, (130, IN_FEATURES), jnp.float32)
    outs_b = jax.block_until_ready(primitive_pred_jit(xb, consts))
    refs_b = primitive_pred_ref(xb, params)
    for o, r in zip(outs_b, refs_b):
        assert o.shape == r.shape, (o.shape, r.shape)
        assert jnp.allclose(o, r, rtol=1e-4, atol=1e-5), "mismatch vs reference (B=130)"

    # TODO(synk): pos_w in the original forward is computed but never used; omitted.
    print("KERNEL_OK")
</pallas_src>

<mosaic_0001>
module attributes {stable_mosaic.version = 11 : i64} {
  func.func @primitive_pred_kernel(%arg0: i32, %arg1: memref<2x168xf32, #tpu.memory_space<vmem>>, %arg2: memref<176x128xf32, #tpu.memory_space<vmem>>, %arg3: memref<2x128xf32, #tpu.memory_space<vmem>>) attributes {dimension_semantics = [#tpu.dimension_semantics<parallel>], iteration_bounds = array<i64: 1>, scalar_prefetch = 0 : i64, scratch_operands = 0 : i64, tpu.core_type = #tpu.core_type<tc>, window_params = [{transform_indices = @transform_0, window_bounds = array<i64: 2, 168>}, {pipeline_mode = #tpu.pipeline_mode<synchronous>, transform_indices = @transform_1, window_bounds = array<i64: 176, 128>}, {transform_indices = @transform_2, window_bounds = array<i64: 2, 128>}]} {
    %c0 = arith.constant 0 : index
    %c0_0 = arith.constant 0 : index
    %0 = vector.load %arg1[%c0, %c0_0] : memref<2x168xf32, #tpu.memory_space<vmem>>, vector<2x168xf32>
    %c0_1 = arith.constant 0 : index
    %c0_2 = arith.constant 0 : index
    %1 = vector.load %arg2[%c0_1, %c0_2] : memref<176x128xf32, #tpu.memory_space<vmem>>, vector<168x128xf32>
    %cst = arith.constant dense<0.000000e+00> : vector<2x128xf32>
    %2 = tpu.matmul %0, %1, %cst {dimension_numbers = #tpu.dot_dimension_numbers<[1], [0], [0], [1], [0, 0, 1, 1], [], []>} : vector<2x168xf32>, vector<168x128xf32>, vector<2x128xf32> -> vector<2x128xf32>
    %c168 = arith.constant 168 : index
    %c0_3 = arith.constant 0 : index
    %3 = vector.load %arg2[%c168, %c0_3] : memref<176x128xf32, #tpu.memory_space<vmem>>, vector<1x128xf32>
    %4 = vector.broadcast %3 : vector<1x128xf32> to vector<2x128xf32>
    %5 = arith.addf %2, %4 : vector<2x128xf32>
    %c169 = arith.constant 169 : index
    %c0_4 = arith.constant 0 : index
    %6 = vector.load %arg2[%c169, %c0_4] : memref<176x128xf32, #tpu.memory_space<vmem>>, vector<1x128xf32>
    %7 = math.tanh %5 : vector<2x128xf32>
    %8 = vector.broadcast %6 : vector<1x128xf32> to vector<2x128xf32>
    %9 = arith.mulf %8, %7 : vector<2x128xf32>
    %c170 = arith.constant 170 : index
    %c0_5 = arith.constant 0 : index
    %10 = vector.load %arg2[%c170, %c0_5] : memref<176x128xf32, #tpu.memory_space<vmem>>, vector<1x128xf32>
    %11 = vector.broadcast %10 : vector<1x128xf32> to vector<2x128xf32>
    %12 = arith.addf %9, %11 : vector<2x128xf32>
    %c171 = arith.constant 171 : index
    %c0_6 = arith.constant 0 : index
    %13 = vector.load %arg2[%c171, %c0_6] : memref<176x128xf32, #tpu.memory_space<vmem>>, vector<1x128xf32>
    %14 = vector.broadcast %13 : vector<1x128xf32> to vector<2x128xf32>
    %15 = arith.mulf %14, %5 : vector<2x128xf32>
    %16 = arith.addf %12, %15 : vector<2x128xf32>
    %c0_7 = arith.constant 0 : index
    %c0_8 = arith.constant 0 : index
    %17 = vector.load %arg3[%c0_7, %c0_8] : memref<2x128xf32, #tpu.memory_space<vmem>>, vector<2x128xf32>
    tpu.vector_store %arg3[%c0_7, %c0_8], %16 {strides = array<i32>} : memref<2x128xf32, #tpu.memory_space<vmem>>, vector<2x128xf32>,
    return
  }
  func.func @transform_0(%arg0: i32) -> (i32, i32) {
    %c0_i32 = arith.constant 0 : i32
    %c0_i32_0 = arith.constant 0 : i32
    return %arg0, %c0_i32 : i32, i32
  }
  func.func @transform_1(%arg0: i32) -> (i32, i32) {
    %c0_i32 = arith.constant 0 : i32
    %c0_i32_0 = arith.constant 0 : i32
    %c0_i32_1 = arith.constant 0 : i32
    return %c0_i32, %c0_i32_0 : i32, i32
  }
  func.func @transform_2(%arg0: i32) -> (i32, i32) {
    %c0_i32 = arith.constant 0 : i32
    %c0_i32_0 = arith.constant 0 : i32
    return %arg0, %c0_i32 : i32, i32
  }
}

</mosaic_0001>

<llo_original>
// kernel: primitive_pred.1
$region0: #{primitive_pred.1}
  #allocation0 [shape = 'u32[]', space=smem, size = 0x4, offset = 0x4, fixed_abs, tag = 'smem constant byte address 0x4 - core index']
  #allocation1 [shape = 'u32[144,128]{1,0:T(1,128)}', space=vmem, size = 0x12000, scoped, tag = 'internal scratch']
  %s0 = inlined_call_operand.hbm [shape: f32[2,168], index: 0, kind: input, shape index: {}]
  %s1 = inlined_call_operand.hbm [shape: f32[176,128], index: 1, kind: input, shape index: {}]
  %s2 = inlined_call_operand.vmem [shape: f32[2,128], index: 2, kind: output, shape index: {}]
  %s3 = sld [smem:[#allocation0]]
  $region26: #{primitive_pred.1} parent=0
    _
  %s5 = ssub.s32 1, %s3
  %s6 = scalar_select 0, %s5, %s3
  $region1: #{primitive_pred.1} parent=0
    #allocation2 [shape = 'u8[2048]{0}', space=vmem, size = 0x800, scoped, tag = 'input window, operand 0, single buffered']
    #allocation3 [shape = 's32[1]{0}', space=sflag, size = 0x4, scoped, tag = 'scoped memory for primitive_pred.1']
    #allocation4 [shape = 'u8[90112]{0}', space=vmem, size = 0x16000, scoped, tag = 'input window, operand 1, single buffered']
    #allocation5 [shape = 's32[1]{0}', space=sflag, size = 0x4, scoped, tag = 'scoped memory for primitive_pred.1']
    %7 = vsyncpa [#allocation3], 0
    %8 = vsyncpa [#allocation5], 0
    // Predicated region
    $region2: #{primitive_pred.1} parent=1 // pred_check
      _
    $region3: #{primitive_pred.1} parent=1 // pred_check_branch
      %10 = sbr.rel (0) target = $region5
    $region4: #{primitive_pred.1} parent=1 // pred_region
      %s12 = ssub.s32 64, 64
      %13 = vsyncadd [#allocation3], %s12
      %s15 = sshll.u32 [#allocation2], 4
      %s16 = int_to_ptr.vmem [resolvable:$true] %s15
      %18 = dma.hbm_to_vmem [thread:$0]  %s0, 64, %s16, [#allocation3]
    $region5: #{primitive_pred.1} parent=1 // pred_fallthru
      _
    // Predicated region
    $region6: #{primitive_pred.1} parent=1 // pred_check
      _
    $region7: #{primitive_pred.1} parent=1 // pred_check_branch
      %20 = sbr.rel (0) target = $region9
    $region8: #{primitive_pred.1} parent=1 // pred_region
      %s22 = ssub.s32 2816, 2816
      %23 = vsyncadd [#allocation5], %s22
      %s24 = sshll.u32 [#allocation4], 4
      %s25 = int_to_ptr.vmem [resolvable:$true] %s24
      %30 = dma.hbm_to_vmem [thread:$0]  %s1, 2816, %s25, [#allocation5], 128, 128, 8
    $region9: #{primitive_pred.1} parent=1 // pred_fallthru
      _
    // Predicated region
    $region10: #{primitive_pred.1} parent=1 // pred_check
      _
    $region11: #{primitive_pred.1} parent=1 // pred_check_branch
      %32 = sbr.rel (0) target = $region13
    $region12: #{primitive_pred.1} parent=1 // pred_region
      %33 = dma.done [#allocation3], 64
    $region13: #{primitive_pred.1} parent=1 // pred_fallthru
      _
    // Predicated region
    $region14: #{primitive_pred.1} parent=1 // pred_check
      _
    $region15: #{primitive_pred.1} parent=1 // pred_check_branch
      %35 = sbr.rel (0) target = $region17
    $region16: #{primitive_pred.1} parent=1 // pred_region
      %36 = dma.done [#allocation5], 2816
    $region17: #{primitive_pred.1} parent=1 // pred_fallthru
      _
    %v37 = vld [vmem:[#allocation2] sm:$0xf]
    %v38 = vld [vmem:[#allocation4] sm:$0xff]
    %v39 = vld [vmem:[#allocation4 + $0x8] sm:$0xff]
    %v40 = vld [vmem:[#allocation4 + $0x10] sm:$0xff]
    %v41 = vld [vmem:[#allocation4 + $0x18] sm:$0xff]
    %v42 = vld [vmem:[#allocation4 + $0x20] sm:$0xff]
    %v43 = vld [vmem:[#allocation4 + $0x28] sm:$0xff]
    %v44 = vld [vmem:[#allocation4 + $0x30] sm:$0xff]
    %v45 = vld [vmem:[#allocation4 + $0x38] sm:$0xff]
    %v46 = vld [vmem:[#allocation4 + $0x40] sm:$0xff]
    %v47 = vld [vmem:[#allocation4 + $0x48] sm:$0xff]
    %v48 = vld [vmem:[#allocation4 + $0x50] sm:$0xff]
    %v49 = vld [vmem:[#allocation4 + $0x58] sm:$0xff]
    %v50 = vld [vmem:[#allocation4 + $0x60] sm:$0xff]
    %v51 = vld [vmem:[#allocation4 + $0x68] sm:$0xff]
    %v52 = vld [vmem:[#allocation4 + $0x70] sm:$0xff]
    %v53 = vld [vmem:[#allocation4 + $0x78] sm:$0xff]
    %v54 = vld [vmem:[#allocation4 + $0x80] sm:$0xff]
    %v55 = vld [vmem:[#allocation4 + $0x88] sm:$0xff]
    %v56 = vld [vmem:[#allocation4 + $0x90] sm:$0xff]
    %v57 = vld [vmem:[#allocation4 + $0x98] sm:$0xff]
    %v58 = vld [vmem:[#allocation4 + $0xa0] sm:$0xff]
    %v59 = vld [vmem:[#allocation4 + $0xa8] sm:$0x1]
    %v60 = vlaneseq
    %v61 = vshrl.u32 %v60, 7
    %v62 = vsub.s32 0, %v61
    %v63 = vrot.slane %v59, %v62
    %v66 = vunpack.c.l.s4 1983009808
    %v67 = vunpack.c.0.s8 %v66
    %v68 = vlaneseq
    %v69 = vshrl.u32 %v68, 7
    %v70 = vsub.s32 %v67, %v69
    %v71 = vrot.slane %v37, %v70
    %v72 = vcombine.high %v71, %v71
    %vm74 = vcmask 326656
    %v75 = vsel %vm74, %v72, 0
    %77 = vmatprep.subr.mxu0 0.0
    %78 = vmatpush1.msra.mxu0 %v38
    %79 = vmatprep.subr.mxu0 0.0
    %80 = vmatpush1.msra.mxu0 %v39
    %81 = vmatprep.subr.mxu0 0.0
    %82 = vmatpush1.msra.mxu0 %v40
    %83 = vmatprep.subr.mxu0 0.0
    %84 = vmatpush1.msra.mxu0 %v41
    %85 = vmatprep.subr.mxu0 0.0
    %86 = vmatpush1.msra.mxu0 %v42
    %87 = vmatprep.subr.mxu0 0.0
    %88 = vmatpush1.msra.mxu0 %v43
    %89 = vmatprep.subr.mxu0 0.0
    %90 = vmatpush1.msra.mxu0 %v44
    %91 = vmatprep.subr.mxu0 0.0
    %92 = vmatpush1.msra.mxu0 %v45
    %93 = vmatprep.subr.mxu0 0.0
    %94 = vmatpush1.msra.mxu0 %v46
    %95 = vmatprep.subr.mxu0 0.0
    %96 = vmatpush1.msra.mxu0 %v47
    %97 = vmatprep.subr.mxu0 0.0
    %98 = vmatpush1.msra.mxu0 %v48
    %99 = vmatprep.subr.mxu0 0.0
    %100 = vmatpush1.msra.mxu0 %v49
    %101 = vmatprep.subr.mxu0 0.0
    %102 = vmatpush1.msra.mxu0 %v50
    %103 = vmatprep.subr.mxu0 0.0
    %104 = vmatpush1.msra.mxu0 %v51
    %105 = vmatprep.subr.mxu0 0.0
    %106 = vmatpush1.msra.mxu0 %v52
    %107 = vmatprep.subr.mxu0 0.0
    %108 = vmatpush1.msra.mxu0 %v53
    %109 = vmatprep.subr.mxu0 0.0
    %110 = vmatpush1.msra.mxu0 %v54
    %111 = vmatprep.subr.mxu0 0.0
    %112 = vmatpush1.msra.mxu0 %v55
    %113 = vmatprep.subr.mxu0 0.0
    %114 = vmatpush1.msra.mxu0 %v56
    %115 = vmatprep.subr.mxu0 0.0
    %116 = vmatpush1.msra.mxu0 %v57
    %117 = vmatprep.subr.mxu0 0.0
    %118 = vmatpush1.msra.mxu0 %v58
    %119 = vmatprep.subr.mxu0 0.0
    %120 = vmatpush1.msra.mxu0 0.0
    %121 = vmatprep.subr.mxu0 0.0
    %122 = vmatpush1.msra.mxu0 0.0
    %123 = vmatprep.subr.mxu0 0.0
    %124 = vmatpush1.msra.mxu0 0.0
    %125 = vmatprep.subr.mxu0 0.0
    %126 = vmatpush1.msra.mxu0 0.0
    %127 = vmatprep.subr.mxu0 0.0
    %128 = vmatpush1.msra.mxu0 0.0
    %129 = vmatprep.subr.mxu0 0.0
    %130 = vmatpush1.msra.mxu0 0.0
    %131 = vmatprep.subr.mxu0 0.0
    %132 = vmatpush1.msra.mxu0 0.0
    %133 = vmatprep.subr.mxu0 0.0
    %134 = vmatpush1.msra.mxu0 0.0
    %135 = vmatprep.subr.mxu0 0.0
    %136 = vmatpush1.msra.mxu0 0.0
    %137 = vmatprep.subr.mxu0 0.0
    %138 = vmatpush1.msra.mxu0 0.0
    %139 = vmatprep.subr.mxu0 0.0
    %140 = vmatpush1.msra.mxu0 0.0
    %141 = vmatprep.mubr.f32.mxu0 %v75
    %142 = vmatmul.mubr.f32.gmra.mrb[0].mxu0 %v71
    %v143 = vpop.f32.mrb[0].mxu0
    %v144 = vadd.f32 %v63, %v143
    %v145 = vpop.f32.mrb[0].mxu0
    %146 = vdwg.mxu0
    %v147 = vld [vmem:[#allocation4 + $0xa9] sm:$0x1]
    %v148 = vtanh.pop %v144
    %v149 = vlaneseq
    %v150 = vshrl.u32 %v149, 7
    %v151 = vsub.s32 0, %v150
    %v152 = vrot.slane %v147, %v151
    %v153 = vmul.f32 %v152, %v148
    %v154 = vld [vmem:[#allocation4 + $0xaa] sm:$0x1]
    %v155 = vlaneseq
    %v156 = vshrl.u32 %v155, 7
    %v157 = vsub.s32 0, %v156
    %v158 = vrot.slane %v154, %v157
    %v159 = vadd.f32 %v153, %v158
    %v160 = vld [vmem:[#allocation4 + $0xab] sm:$0x1]
    %v161 = vlaneseq
    %v162 = vshrl.u32 %v161, 7
    %v163 = vsub.s32 0, %v162
    %v164 = vrot.slane %v160, %v163
    %v165 = vmul.f32 %v164, %v144
    %v166 = vadd.f32 %v159, %v165
    %167 = vst [vmem:[%s2] sm:$0x3] %v166
    // Predicated region
    $region18: #{primitive_pred.1} parent=1 // pred_check
      _
    $region19: #{primitive_pred.1} parent=1 // pred_check_branch
      %169 = sbr.rel (0) target = $region21
    $region20: #{primitive_pred.1} parent=1 // pred_region
      _
    $region21: #{primitive_pred.1} parent=1 // pred_fallthru
      _
    // Predicated region
    $region22: #{primitive_pred.1} parent=1 // pred_check
      _
    $region23: #{primitive_pred.1} parent=1 // pred_check_branch
      %171 = sbr.rel (0) target = $region25
    $region24: #{primitive_pred.1} parent=1 // pred_region
      _
    $region25: #{primitive_pred.1} parent=1 // pred_fallthru
      _
    %172 = vsyncpa [#allocation3], 1
    %173 = vsyncpa [#allocation5], 1

</llo_original>
